<compile_context>
chip_gen: v7x
topology: tpu7x:2x2x1
jax: 0.10.0
libtpu: 0.0.40
codegen_flags: <defaults>
</compile_context>

<pallas_src>
import functools

import numpy as np
import jax
import jax.numpy as jnp
from jax.experimental import pallas as pl
from jax.experimental.pallas import tpu as pltpu

C_IMG = 3          # image channels (fixed to 3, as in the module)
HID = 32           # hidden width of the synthetic denoiser
NUM_CLASSES = 10
T_DIFF = 8         # number of diffusion timesteps


# ----------------------------------------------------------------------------
# Fused Pallas kernel: the whole reverse-diffusion chain of one image.
# grid = (batch, timesteps); one grid step = one timestep for one image.
# ----------------------------------------------------------------------------
def _fused_sample_kernel(coeffs_ref, xinit_ref, bias_ref, w1t_ref, w2t_ref,
                         b2_ref, *rest, use_ddim, clip_denoised):
    if use_ddim:
        (out_ref,) = rest
        z_ref = None
    else:
        z_ref, out_ref = rest

    t = pl.program_id(1)           # step index (0 == timestep t_start)

    @pl.when(t == 0)
    def _():
        # x_T (or q_sample(start_image)); out_ref is the resident VMEM state.
        out_ref[...] = xinit_ref[...]

    x = out_ref[0]                 # (C, HW) current x_t, channels-on-sublanes

    # ---- denoiser eps(x_t, t, y): 1x1-conv MLP ------------------------------
    # First layer: K = C = 3 contraction as 3 broadcast FMAs on the VPU
    # (an MXU matmul would use 3/256 rows).  bias = b1 + temb[t] + cls[y] was
    # prefused on the host and arrives as a (HID, 1) column (lane broadcast).
    w1t = w1t_ref[...]             # (HID, C)
    h = bias_ref[0]                # (HID, 1)
    for c in range(C_IMG):
        h = h + w1t[:, c:c + 1] * x[c:c + 1, :]              # (HID, HW)
    h = h * jax.nn.sigmoid(h)                                 # SiLU (EUP)
    # Second layer: K = HID contraction on the MXU; output stays lane-dense.
    eps = jnp.dot(w2t_ref[...], h,
                  preferred_element_type=jnp.float32) + b2_ref[...]   # (C, HW)

    # ---- posterior / DDIM update (per-step scalar coefficients in SMEM) -----
    c0 = coeffs_ref[t, 0]          # sqrt(1/abar_t)
    c1 = coeffs_ref[t, 1]          # sqrt(1/abar_t - 1)
    cA = coeffs_ref[t, 2]          # weight of pred_x0

    pred_x0 = c0 * x - c1 * eps
    if clip_denoised:
        pred_x0 = jnp.clip(pred_x0, -1.0, 1.0)

    if use_ddim:                   # eta = 0 DDIM update
        if clip_denoised:
            # guided-diffusion recomputes eps from the clipped x0
            eps_use = coeffs_ref[t, 6] * x - coeffs_ref[t, 7] * pred_x0
        else:
            eps_use = eps
        x_new = cA * pred_x0 + coeffs_ref[t, 4] * eps_use
    else:                          # DDPM posterior mean + fixed-small noise
        x_new = (cA * pred_x0 + coeffs_ref[t, 3] * x
                 + coeffs_ref[t, 5] * z_ref[0, 0])

    out_ref[0] = x_new


def _run_fused_sampler(coeffs, x_init, bias_tab, w1t, w2t, b2c, z,
                       *, use_ddim, clip_denoised):
    B, C, HW = x_init.shape
    n_steps = coeffs.shape[0]

    kernel = functools.partial(_fused_sample_kernel, use_ddim=use_ddim,
                               clip_denoised=clip_denoised)

    in_specs = [
        pl.BlockSpec(memory_space=pltpu.MemorySpace.SMEM),               # coeffs
        pl.BlockSpec((1, C, HW), lambda b, t: (b, 0, 0)),                # x_init
        pl.BlockSpec((1, HID, 1),
                     lambda b, t, ns=n_steps: (b * ns + t, 0, 0)),       # bias(b,t)
        pl.BlockSpec((HID, C), lambda b, t: (0, 0)),                     # W1^T
        pl.BlockSpec((C, HID), lambda b, t: (0, 0)),                     # W2^T
        pl.BlockSpec((C, 1), lambda b, t: (0, 0)),                       # b2
    ]
    args = [coeffs, x_init, bias_tab, w1t, w2t, b2c]
    if not use_ddim:                                                      # z_t
        in_specs.append(pl.BlockSpec((1, 1, C, HW), lambda b, t: (b, t, 0, 0)))
        args.append(z)

    n_px = B * HW
    flops = int(n_steps * n_px * (4 * C * HID + 4 * HID + 16 * C))
    transcendentals = int(n_steps * n_px * HID)
    bytes_accessed = int(4 * (2 * B * C * HW
                              + (0 if use_ddim else B * n_steps * C * HW)
                              + B * n_steps * HID
                              + n_steps * 8 + 2 * HID * C + HID + C))

    return pl.pallas_call(
        kernel,
        out_shape=jax.ShapeDtypeStruct((B, C, HW), jnp.float32),
        grid=(B, n_steps),
        in_specs=in_specs,
        out_specs=pl.BlockSpec((1, C, HW), lambda b, t: (b, 0, 0)),
        compiler_params=pltpu.CompilerParams(
            dimension_semantics=("parallel", "arbitrary")),
        cost_estimate=pl.CostEstimate(flops=flops,
                                      transcendentals=transcendentals,
                                      bytes_accessed=bytes_accessed),
    )(*args)


# ----------------------------------------------------------------------------
# Diffusion schedule + parameter setup (plain JAX / numpy glue)
# ----------------------------------------------------------------------------
def make_params(seed=0):
    key = jax.random.PRNGKey(seed)
    k1, k2, k3, k4 = jax.random.split(key, 4)
    return {
        "betas": np.linspace(1e-4, 2e-2, T_DIFF, dtype=np.float64),
        "W1": (0.02 * jax.random.normal(k1, (C_IMG, HID))).astype(jnp.float32),
        "b1": jnp.zeros((HID,), jnp.float32),
        "W2": (0.02 * jax.random.normal(k2, (HID, C_IMG))).astype(jnp.float32),
        "b2": jnp.zeros((C_IMG,), jnp.float32),
        "temb": (0.1 * jax.random.normal(k3, (T_DIFF, HID))).astype(jnp.float32),
        "cls_emb": (0.1 * jax.random.normal(k4, (NUM_CLASSES, HID))).astype(jnp.float32),
    }


def _build_coeff_table(betas, t_start, use_ddim):
    betas = np.asarray(betas, np.float64)
    alphas = 1.0 - betas
    abar = np.cumprod(alphas)
    abar_prev = np.append(1.0, abar[:-1])

    c0 = np.sqrt(1.0 / abar)                       # pred_x0 from eps
    c1 = np.sqrt(1.0 / abar - 1.0)
    e0 = 1.0 / np.sqrt(1.0 - abar)                 # eps from (clipped) x0
    e1 = np.sqrt(abar) / np.sqrt(1.0 - abar)
    if use_ddim:                                   # eta = 0 DDIM update
        cA = np.sqrt(abar_prev)
        cB = np.zeros_like(betas)
        cC = np.sqrt(1.0 - abar_prev)
        cD = np.zeros_like(betas)
    else:                                          # DDPM posterior mean + noise
        cA = betas * np.sqrt(abar_prev) / (1.0 - abar)
        cB = (1.0 - abar_prev) * np.sqrt(alphas) / (1.0 - abar)
        cC = np.zeros_like(betas)
        cD = np.sqrt(betas * (1.0 - abar_prev) / (1.0 - abar))  # fixed-small var
        cD[0] = 0.0                                # no noise at t == 0
    tab = np.stack([c0, c1, cA, cB, cC, cD, e0, e1], axis=-1)   # (T, 8)
    order = np.arange(t_start, -1, -1)             # timesteps in sampling order
    return (jnp.asarray(tab[order], jnp.float32), order,
            float(np.sqrt(abar[t_start])), float(np.sqrt(1.0 - abar[t_start])))


def _prepare(params, *, clip_denoised, model_kwargs, start_t, start_image,
             use_ddim, noise, image_size, noise_seed=1):
    del clip_denoised  # trace-time flag; handled in the kernel specialisation
    B = noise.shape[0]
    H = W = image_size
    HW = H * W

    # start_t <= 0 means "run the full reverse chain" (the call site passes
    # max(start_t, 0)); start_t > 0 resumes the chain at that timestep.
    t_start = start_t if start_t > 0 else T_DIFF - 1
    n_steps = t_start + 1

    coeffs, order, sqrt_abar_s, sqrt_1m_abar_s = _build_coeff_table(
        params["betas"], t_start, use_ddim)

    # class conditioning (model_kwargs['y']) -> per-image hidden bias
    y = model_kwargs.get("y", None) if model_kwargs else None
    if y is not None:
        cls = params["cls_emb"][jnp.asarray(y, jnp.int32)]          # (B, HID)
    else:
        cls = jnp.zeros((B, HID), jnp.float32)

    # pre-fused per-(image, step) hidden bias: b1 + temb[t] + cls[y]
    temb_steps = params["temb"][jnp.asarray(order)]                 # (T', HID)
    bias_bt = (params["b1"][None, None, :] + temb_steps[None, :, :]
               + cls[:, None, :])                                   # (B, T', HID)
    bias_tab = bias_bt.reshape(B * n_steps, HID, 1)

    # NCHW is already channels-on-sublanes / pixels-on-lanes: just flatten HxW.
    noise_flat = noise.astype(jnp.float32).reshape(B, C_IMG, HW)
    if start_image is not None:                                     # q_sample
        si = start_image.astype(jnp.float32).reshape(B, C_IMG, HW)
        x_init = sqrt_abar_s * si + sqrt_1m_abar_s * noise_flat
    else:
        x_init = noise_flat

    z = None
    if not use_ddim:   # per-step Gaussian noise only needed on the DDPM path
        z = jax.random.normal(jax.random.PRNGKey(noise_seed),
                              (B, n_steps, C_IMG, HW), jnp.float32)

    return dict(coeffs=coeffs, x_init=x_init, bias_tab=bias_tab, bias_bt=bias_bt,
                w1t=jnp.transpose(params["W1"]),        # (HID, C)
                w2t=jnp.transpose(params["W2"]),        # (C, HID)
                b2c=params["b2"].reshape(C_IMG, 1),     # (C, 1)
                z=z, B=B, H=H, W=W)


# ----------------------------------------------------------------------------
# Sampler.forward equivalent (Pallas) + pure-JAX reference for validation
# ----------------------------------------------------------------------------
def sampler_forward(params, *, clip_denoised, model_kwargs, start_t,
                    start_image, use_ddim, noise, image_size, noise_seed=1):
    p = _prepare(params, clip_denoised=clip_denoised, model_kwargs=model_kwargs,
                 start_t=start_t, start_image=start_image, use_ddim=use_ddim,
                 noise=noise, image_size=image_size, noise_seed=noise_seed)
    out = _run_fused_sampler(p["coeffs"], p["x_init"], p["bias_tab"],
                             p["w1t"], p["w2t"], p["b2c"], p["z"],
                             use_ddim=use_ddim, clip_denoised=clip_denoised)
    return out.reshape(p["B"], C_IMG, p["H"], p["W"])   # NCHW, like the module


def sampler_forward_reference(params, *, clip_denoised, model_kwargs, start_t,
                              start_image, use_ddim, noise, image_size,
                              noise_seed=1):
    p = _prepare(params, clip_denoised=clip_denoised, model_kwargs=model_kwargs,
                 start_t=start_t, start_image=start_image, use_ddim=use_ddim,
                 noise=noise, image_size=image_size, noise_seed=noise_seed)
    coeffs = np.asarray(p["coeffs"])
    hi = jax.lax.Precision.HIGHEST
    x = p["x_init"]
    for i in range(coeffs.shape[0]):
        bias = p["bias_bt"][:, i, :, None]                         # (B, HID, 1)
        h = jnp.einsum("hc,bcn->bhn", p["w1t"], x, precision=hi) + bias
        h = h * jax.nn.sigmoid(h)
        eps = jnp.einsum("ch,bhn->bcn", p["w2t"], h, precision=hi) + p["b2c"][None]
        c = coeffs[i]
        x0 = c[0] * x - c[1] * eps
        if clip_denoised:
            x0 = jnp.clip(x0, -1.0, 1.0)
        if use_ddim:
            eps_use = (c[6] * x - c[7] * x0) if clip_denoised else eps
            x = c[2] * x0 + c[4] * eps_use
        else:
            x = c[2] * x0 + c[3] * x + c[5] * p["z"][:, i]
    return x.reshape(p["B"], C_IMG, image_size, image_size)


# ----------------------------------------------------------------------------
if __name__ == "__main__":
    B = 2
    IMAGE_SIZE = 16
    params = make_params(seed=0)

    noise = jax.random.normal(jax.random.PRNGKey(0),
                              (B, C_IMG, IMAGE_SIZE, IMAGE_SIZE), jnp.float32)
    labels = jnp.array([0, 1], jnp.int32)

    common = dict(start_t=-1, start_image=None, noise=noise,
                  image_size=IMAGE_SIZE)

    # DDPM path (p_sample_loop equivalent), class-conditional
    out_ddpm = sampler_forward(params, clip_denoised=True,
                               model_kwargs={"y": labels}, use_ddim=False,
                               **common)
    # DDIM path (ddim_sample_loop equivalent), unconditional
    out_ddim = sampler_forward(params, clip_denoised=True, model_kwargs={},
                               use_ddim=True, **common)

    out_ddpm = jax.block_until_ready(out_ddpm)
    out_ddim = jax.block_until_ready(out_ddim)

    assert out_ddpm.shape == (B, C_IMG, IMAGE_SIZE, IMAGE_SIZE)
    assert out_ddim.shape == (B, C_IMG, IMAGE_SIZE, IMAGE_SIZE)
    assert bool(jnp.all(jnp.isfinite(out_ddpm)))
    assert bool(jnp.all(jnp.isfinite(out_ddim)))

    # correctness vs a pure-JAX reference of the same schedule / denoiser
    ref_ddpm = sampler_forward_reference(params, clip_denoised=True,
                                         model_kwargs={"y": labels},
                                         use_ddim=False, **common)
    ref_ddim = sampler_forward_reference(params, clip_denoised=True,
                                         model_kwargs={}, use_ddim=True,
                                         **common)
    np.testing.assert_allclose(np.asarray(out_ddpm), np.asarray(ref_ddpm),
                               rtol=5e-3, atol=5e-3)
    np.testing.assert_allclose(np.asarray(out_ddim), np.asarray(ref_ddim),
                               rtol=5e-3, atol=5e-3)

    print("KERNEL_OK")
</pallas_src>

<mosaic_0001>
module attributes {stable_mosaic.version = 11 : i64} {
  func.func @_fused_sample_kernel(%arg0: i32, %arg1: i32, %arg2: memref<8x8xf32, #tpu.memory_space<smem>>, %arg3: memref<1x3x256xf32, #tpu.memory_space<vmem>>, %arg4: memref<1x32x1xf32, #tpu.memory_space<vmem>>, %arg5: memref<32x3xf32, #tpu.memory_space<vmem>>, %arg6: memref<3x32xf32, #tpu.memory_space<vmem>>, %arg7: memref<3x1xf32, #tpu.memory_space<vmem>>, %arg8: memref<1x1x3x256xf32, #tpu.memory_space<vmem>>, %arg9: memref<1x3x256xf32, #tpu.memory_space<vmem>>) attributes {dimension_semantics = [#tpu.dimension_semantics<parallel>, #tpu.dimension_semantics<arbitrary>], iteration_bounds = array<i64: 2, 8>, scalar_prefetch = 0 : i64, scratch_operands = 0 : i64, tpu.core_type = #tpu.core_type<tc>, window_params = [{transform_indices = @transform_0, window_bounds = array<i64: 8, 8>}, {transform_indices = @transform_1, window_bounds = array<i64: 1, 3, 256>}, {transform_indices = @transform_2, window_bounds = array<i64: 1, 32, 1>}, {pipeline_mode = #tpu.pipeline_mode<synchronous>, transform_indices = @transform_3, window_bounds = array<i64: 32, 3>}, {pipeline_mode = #tpu.pipeline_mode<synchronous>, transform_indices = @transform_4, window_bounds = array<i64: 3, 32>}, {pipeline_mode = #tpu.pipeline_mode<synchronous>, transform_indices = @transform_5, window_bounds = array<i64: 3, 1>}, {transform_indices = @transform_6, window_bounds = array<i64: 1, 1, 3, 256>}, {transform_indices = @transform_7, window_bounds = array<i64: 1, 3, 256>}]} {
    %c0_i32 = arith.constant 0 : i32
    %0 = arith.cmpi eq, %arg1, %c0_i32 : i32
    %1 = arith.extui %0 : i1 to i32
    %c0_i32_0 = arith.constant 0 : i32
    %2 = arith.cmpi ne, %1, %c0_i32_0 : i32
    scf.if %2 {
      %c0_23 = arith.constant 0 : index
      %c0_24 = arith.constant 0 : index
      %c0_25 = arith.constant 0 : index
      %70 = vector.load %arg3[%c0_23, %c0_24, %c0_25] : memref<1x3x256xf32, #tpu.memory_space<vmem>>, vector<1x3x256xf32>
      %c0_26 = arith.constant 0 : index
      %c0_27 = arith.constant 0 : index
      %c0_28 = arith.constant 0 : index
      %71 = vector.load %arg9[%c0_26, %c0_27, %c0_28] : memref<1x3x256xf32, #tpu.memory_space<vmem>>, vector<1x3x256xf32>
      tpu.vector_store %arg9[%c0_26, %c0_27, %c0_28], %70 {strides = array<i32>} : memref<1x3x256xf32, #tpu.memory_space<vmem>>, vector<1x3x256xf32>,
    } else {
    }
    %c0 = arith.constant 0 : index
    %c0_1 = arith.constant 0 : index
    %c0_2 = arith.constant 0 : index
    %3 = vector.load %arg9[%c0, %c0_1, %c0_2] : memref<1x3x256xf32, #tpu.memory_space<vmem>>, vector<1x3x256xf32>
    %4 = vector.shape_cast %3 : vector<1x3x256xf32> to vector<3x256xf32>
    %c0_3 = arith.constant 0 : index
    %c0_4 = arith.constant 0 : index
    %5 = vector.load %arg5[%c0_3, %c0_4] : memref<32x3xf32, #tpu.memory_space<vmem>>, vector<32x3xf32>
    %c0_5 = arith.constant 0 : index
    %c0_6 = arith.constant 0 : index
    %c0_7 = arith.constant 0 : index
    %6 = vector.load %arg4[%c0_5, %c0_6, %c0_7] : memref<1x32x1xf32, #tpu.memory_space<vmem>>, vector<1x32x1xf32>
    %7 = vector.shape_cast %6 : vector<1x32x1xf32> to vector<32x1xf32>
    %8 = vector.extract_strided_slice %5 {offsets = [0, 0], sizes = [32, 1], strides = [1, 1]} : vector<32x3xf32> to vector<32x1xf32>
    %9 = vector.extract_strided_slice %4 {offsets = [0, 0], sizes = [1, 256], strides = [1, 1]} : vector<3x256xf32> to vector<1x256xf32>
    %10 = vector.broadcast %8 : vector<32x1xf32> to vector<32x256xf32>
    %11 = vector.broadcast %9 : vector<1x256xf32> to vector<32x256xf32>
    %12 = arith.mulf %10, %11 : vector<32x256xf32>
    %13 = vector.broadcast %7 : vector<32x1xf32> to vector<32x256xf32>
    %14 = arith.addf %13, %12 : vector<32x256xf32>
    %15 = vector.extract_strided_slice %5 {offsets = [0, 1], sizes = [32, 1], strides = [1, 1]} : vector<32x3xf32> to vector<32x1xf32>
    %16 = vector.extract_strided_slice %4 {offsets = [1, 0], sizes = [1, 256], strides = [1, 1]} : vector<3x256xf32> to vector<1x256xf32>
    %17 = vector.broadcast %15 : vector<32x1xf32> to vector<32x256xf32>
    %18 = vector.broadcast %16 : vector<1x256xf32> to vector<32x256xf32>
    %19 = arith.mulf %17, %18 : vector<32x256xf32>
    %20 = arith.addf %14, %19 : vector<32x256xf32>
    %21 = vector.extract_strided_slice %5 {offsets = [0, 2], sizes = [32, 1], strides = [1, 1]} : vector<32x3xf32> to vector<32x1xf32>
    %22 = vector.extract_strided_slice %4 {offsets = [2, 0], sizes = [1, 256], strides = [1, 1]} : vector<3x256xf32> to vector<1x256xf32>
    %23 = vector.broadcast %21 : vector<32x1xf32> to vector<32x256xf32>
    %24 = vector.broadcast %22 : vector<1x256xf32> to vector<32x256xf32>
    %25 = arith.mulf %23, %24 : vector<32x256xf32>
    %26 = arith.addf %20, %25 : vector<32x256xf32>
    %27 = arith.negf %26 : vector<32x256xf32>
    %28 = math.exp %27 : vector<32x256xf32>
    %cst = arith.constant 1.000000e+00 : f32
    %29 = vector.broadcast %cst : f32 to vector<32x256xf32>
    %30 = arith.addf %29, %28 : vector<32x256xf32>
    %31 = arith.divf %29, %30 : vector<32x256xf32>
    %32 = arith.mulf %26, %31 : vector<32x256xf32>
    %c0_8 = arith.constant 0 : index
    %c0_9 = arith.constant 0 : index
    %33 = vector.load %arg6[%c0_8, %c0_9] : memref<3x32xf32, #tpu.memory_space<vmem>>, vector<3x32xf32>
    %cst_10 = arith.constant dense<0.000000e+00> : vector<3x256xf32>
    %34 = tpu.matmul %33, %32, %cst_10 {dimension_numbers = #tpu.dot_dimension_numbers<[1], [0], [0], [1], [0, 0, 1, 1], [], []>} : vector<3x32xf32>, vector<32x256xf32>, vector<3x256xf32> -> vector<3x256xf32>
    %c0_11 = arith.constant 0 : index
    %c0_12 = arith.constant 0 : index
    %35 = vector.load %arg7[%c0_11, %c0_12] : memref<3x1xf32, #tpu.memory_space<vmem>>, vector<3x1xf32>
    %36 = vector.broadcast %35 : vector<3x1xf32> to vector<3x256xf32>
    %37 = arith.addf %34, %36 : vector<3x256xf32>
    %38 = arith.index_cast %arg1 : i32 to index
    %c0_13 = arith.constant 0 : index
    %39 = memref.load %arg2[%38, %c0_13] : memref<8x8xf32, #tpu.memory_space<smem>>
    %40 = arith.index_cast %arg1 : i32 to index
    %c1 = arith.constant 1 : index
    %41 = memref.load %arg2[%40, %c1] : memref<8x8xf32, #tpu.memory_space<smem>>
    %42 = arith.index_cast %arg1 : i32 to index
    %c2 = arith.constant 2 : index
    %43 = memref.load %arg2[%42, %c2] : memref<8x8xf32, #tpu.memory_space<smem>>
    %44 = vector.broadcast %39 : f32 to vector<3x256xf32>
    %45 = arith.mulf %44, %4 : vector<3x256xf32>
    %46 = vector.broadcast %41 : f32 to vector<3x256xf32>
    %47 = arith.mulf %46, %37 : vector<3x256xf32>
    %48 = arith.subf %45, %47 : vector<3x256xf32>
    %cst_14 = arith.constant -1.000000e+00 : f32
    %cst_15 = arith.constant 1.000000e+00 : f32
    %49 = vector.broadcast %cst_14 : f32 to vector<3x256xf32>
    %50 = arith.maximumf %49, %48 : vector<3x256xf32>
    %51 = vector.broadcast %cst_15 : f32 to vector<3x256xf32>
    %52 = arith.minimumf %51, %50 : vector<3x256xf32>
    %53 = vector.broadcast %43 : f32 to vector<3x256xf32>
    %54 = arith.mulf %53, %52 : vector<3x256xf32>
    %55 = arith.index_cast %arg1 : i32 to index
    %c3 = arith.constant 3 : index
    %56 = memref.load %arg2[%55, %c3] : memref<8x8xf32, #tpu.memory_space<smem>>
    %57 = vector.broadcast %56 : f32 to vector<3x256xf32>
    %58 = arith.mulf %57, %4 : vector<3x256xf32>
    %59 = arith.addf %54, %58 : vector<3x256xf32>
    %60 = arith.index_cast %arg1 : i32 to index
    %c5 = arith.constant 5 : index
    %61 = memref.load %arg2[%60, %c5] : memref<8x8xf32, #tpu.memory_space<smem>>
    %c0_16 = arith.constant 0 : index
    %c0_17 = arith.constant 0 : index
    %c0_18 = arith.constant 0 : index
    %c0_19 = arith.constant 0 : index
    %62 = vector.load %arg8[%c0_16, %c0_17, %c0_18, %c0_19] : memref<1x1x3x256xf32, #tpu.memory_space<vmem>>, vector<1x1x3x256xf32>
    %63 = vector.shape_cast %62 : vector<1x1x3x256xf32> to vector<3x256xf32>
    %64 = vector.broadcast %61 : f32 to vector<3x256xf32>
    %65 = arith.mulf %64, %63 : vector<3x256xf32>
    %66 = arith.addf %59, %65 : vector<3x256xf32>
    %c0_20 = arith.constant 0 : index
    %c0_21 = arith.constant 0 : index
    %c0_22 = arith.constant 0 : index
    %67 = vector.load %arg9[%c0_20, %c0_21, %c0_22] : memref<1x3x256xf32, #tpu.memory_space<vmem>>, vector<1x3x256xf32>
    %68 = vector.shape_cast %67 : vector<1x3x256xf32> to vector<3x256xf32>
    %69 = vector.shape_cast %66 : vector<3x256xf32> to vector<1x3x256xf32>
    tpu.vector_store %arg9[%c0_20, %c0_21, %c0_22], %69 {strides = array<i32>} : memref<1x3x256xf32, #tpu.memory_space<vmem>>, vector<1x3x256xf32>,
    return
  }
  func.func @transform_0(%arg0: i32, %arg1: i32) -> (i32, i32) {
    %c0_i32 = arith.constant 0 : i32
    %c0_i32_0 = arith.constant 0 : i32
    %c0_i32_1 = arith.constant 0 : i32
    return %c0_i32, %c0_i32_0 : i32, i32
  }
  func.func @transform_1(%arg0: i32, %arg1: i32) -> (i32, i32, i32) {
    %c0_i32 = arith.constant 0 : i32
    %c0_i32_0 = arith.constant 0 : i32
    %c0_i32_1 = arith.constant 0 : i32
    return %arg0, %c0_i32, %c0_i32_0 : i32, i32, i32
  }
  func.func @transform_2(%arg0: i32, %arg1: i32) -> (i32, i32, i32) {
    %c8_i32 = arith.constant 8 : i32
    %0 = arith.muli %arg0, %c8_i32 : i32
    %1 = arith.addi %0, %arg1 : i32
    %c0_i32 = arith.constant 0 : i32
    %c0_i32_0 = arith.constant 0 : i32
    %c0_i32_1 = arith.constant 0 : i32
    return %1, %c0_i32, %c0_i32_0 : i32, i32, i32
  }
  func.func @transform_3(%arg0: i32, %arg1: i32) -> (i32, i32) {
    %c0_i32 = arith.constant 0 : i32
    %c0_i32_0 = arith.constant 0 : i32
    %c0_i32_1 = arith.constant 0 : i32
    return %c0_i32, %c0_i32_0 : i32, i32
  }
  func.func @transform_4(%arg0: i32, %arg1: i32) -> (i32, i32) {
    %c0_i32 = arith.constant 0 : i32
    %c0_i32_0 = arith.constant 0 : i32
    %c0_i32_1 = arith.constant 0 : i32
    return %c0_i32, %c0_i32_0 : i32, i32
  }
  func.func @transform_5(%arg0: i32, %arg1: i32) -> (i32, i32) {
    %c0_i32 = arith.constant 0 : i32
    %c0_i32_0 = arith.constant 0 : i32
    %c0_i32_1 = arith.constant 0 : i32
    return %c0_i32, %c0_i32_0 : i32, i32
  }
  func.func @transform_6(%arg0: i32, %arg1: i32) -> (i32, i32, i32, i32) {
    %c0_i32 = arith.constant 0 : i32
    %c0_i32_0 = arith.constant 0 : i32
    %c0_i32_1 = arith.constant 0 : i32
    return %arg0, %arg1, %c0_i32, %c0_i32_0 : i32, i32, i32, i32
  }
  func.func @transform_7(%arg0: i32, %arg1: i32) -> (i32, i32, i32) {
    %c0_i32 = arith.constant 0 : i32
    %c0_i32_0 = arith.constant 0 : i32
    %c0_i32_1 = arith.constant 0 : i32
    return %arg0, %c0_i32, %c0_i32_0 : i32, i32, i32
  }
}

</mosaic_0001>

<llo_original>
// kernel: tpu_custom_call.1
$region0: #{tpu_custom_call.1}
  #allocation0 [shape = 'u32[]', space=smem, size = 0x4, offset = 0x4, fixed_abs, tag = 'smem constant byte address 0x4 - core index']
  #allocation1 [shape = 'u32[144,128]{1,0:T(1,128)}', space=vmem, size = 0x12000, scoped, tag = 'internal scratch']
  %s0 = inlined_call_operand.vmem [shape: f32[8,8], index: 0, kind: input, shape index: {}]
  %s1 = inlined_call_operand.vmem [shape: f32[2,3,256], index: 1, kind: input, shape index: {}]
  %s2 = inlined_call_operand.vmem [shape: f32[16,32,1], index: 2, kind: input, shape index: {}]
  %s3 = inlined_call_operand.vmem [shape: f32[32,3], index: 3, kind: input, shape index: {}]
  %s4 = inlined_call_operand.vmem [shape: f32[3,32], index: 4, kind: input, shape index: {}]
  %s5 = inlined_call_operand.vmem [shape: f32[3,1], index: 5, kind: input, shape index: {}]
  %s6 = inlined_call_operand.vmem [shape: f32[2,8,3,256], index: 6, kind: input, shape index: {}]
  %s7 = inlined_call_operand.vmem [shape: f32[2,3,256], index: 7, kind: output, shape index: {}]
  %s8 = sld [smem:[#allocation0]]
  $region69: #{tpu_custom_call.1} parent=0
    _
  %s10 = ssub.s32 1, %s8
  %s11 = scalar_select 0, %s10, %s8
  $region1: #{tpu_custom_call.1} parent=0
    #allocation2 [shape = 'u8[4096]{0}', space=smem, size = 0x1000, scoped, tag = 'input window, operand 0, single buffered']
    #allocation3 [shape = 's32[2]{0}', space=sflag, size = 0x8, scoped, tag = 'scoped memory for tpu_custom_call.1']
    %12 = vsyncpa [#allocation3], 0
    loop: start=0, step=1, limit=18
    $region2: #{tpu_custom_call.1} parent=1 // loop_pre_header
      _
    $region3: #{tpu_custom_call.1} parent=1 // loop_header
      %s14 = sphi 0, %s18
      %p15 = scmp.ge.s32.totalorder %s14, 18
      %s21 = sphi 0, %s33
      %s22 = sphi 0, %s29
      %s23 = sphi 0, %s21
      %s24 = sphi 0, %s22
      %s25 = sphi 0, %s23
      %s26 = sphi 0, %s24
      %s34 = sphi 0, %s34
      %s36 = sphi 0, %s34
      %s37 = sphi 0, %s36
      %s51 = sphi 0, %s37
      %s57 = sphi 0, %s59
      %s60 = sphi 0, %s57
      %s61 = sphi 0, %s60
      %s77 = sphi 0, %s61
      %s87 = sphi 0, %s89
      %s90 = sphi 0, %s87
      %s91 = sphi 0, %s90
      %s107 = sphi 0, %s91
      %s111 = sphi 0, %s111
      %s113 = sphi 0, %s111
      %s114 = sphi 0, %s113
      %s128 = sphi 0, %s114
      %s132 = sphi 0, %s132
      %s134 = sphi 0, %s132
      %s135 = sphi 0, %s134
      %s149 = sphi 0, %s135
      %s153 = sphi 0, %s153
      %s155 = sphi 0, %s153
      %s156 = sphi 0, %s155
      %s170 = sphi 0, %s156
      %s178 = sphi 0, %s180
      %s181 = sphi 0, %s178
      %s182 = sphi 0, %s181
      %s198 = sphi 0, %s182
      %s204 = sphi 0, %s206
      %s207 = sphi 0, %s204
      %s208 = sphi 0, %s207
      %s224 = sphi 0, %s208
    $region4: #{tpu_custom_call.1} parent=1 // loop_header_branch
      %17 = sbr.rel (%p15) target = $region8
    $region5: #{tpu_custom_call.1} parent=1 // loop_body
      %s19 = ssub.s32 %s14, 1
      %s20 = ssub.s32 %s14, 2
      %s27 = sadd.s32 1, %s22
      %p28 = scmp.ge.s32.totalorder %s27, 8
      %s29 = scalar_select %p28, 0, %s27
      %s30 = sadd.s32 1, %s21
      %s31 = scalar_select %p28, %s30, %s21
      %p32 = scmp.ge.s32.totalorder %s31, 2
      %s33 = scalar_select %p32, 0, %s31
      %s35 = sadd.s32 %s34, 1
      %p38 = scmp.eq.s32.totalorder %s14, 15
      %p39 = scmp.ne.s32.totalorder %s34, %s36
      %p40 = scmp.eq.s32.totalorder %s14, 0
      %p41 = por %p39, %p40
      %p42 = scmp.ne.s32.totalorder %s34, %s36
      %p43 = scmp.eq.s32.totalorder %s19, 15
      %p44 = por %p42, %p43
      %p45 = scmp.ne.s32.totalorder %s36, %s37
      %p46 = scmp.eq.s32.totalorder %s19, 0
      %p47 = por %p45, %p46
      %p48 = scmp.ne.s32.totalorder %s36, %s37
      %p49 = scmp.eq.s32.totalorder %s20, 15
      %p50 = por %p48, %p49
      %p52 = scmp.ne.s32.totalorder %s37, %s51
      %p53 = scmp.eq.s32.totalorder %s20, 0
      %p54 = por %p52, %p53
      %s55 = ssub.s32 %s21, %s33
      %p56 = scmp.eq.s32.totalorder %s55, 0
      %s58 = sadd.s32 %s57, 1
      %s59 = scalar_select %p56, %s57, %s58
      %p62 = pneg %p56
      %p63 = scmp.eq.s32.totalorder %s14, 15
      %p64 = por %p62, %p63
      %p65 = scmp.ne.s32.totalorder %s57, %s60
      %p66 = scmp.eq.s32.totalorder %s14, 0
      %p67 = por %p65, %p66
      %p68 = scmp.ne.s32.totalorder %s57, %s60
      %p69 = scmp.eq.s32.totalorder %s19, 15
      %p70 = por %p68, %p69
      %p71 = scmp.ne.s32.totalorder %s60, %s61
      %p72 = scmp.eq.s32.totalorder %s19, 0
      %p73 = por %p71, %p72
      %p74 = scmp.ne.s32.totalorder %s60, %s61
      %p75 = scmp.eq.s32.totalorder %s20, 15
      %p76 = por %p74, %p75
      %p78 = scmp.ne.s32.totalorder %s61, %s77
      %p79 = scmp.eq.s32.totalorder %s20, 0
      %p80 = por %p78, %p79
      %s81 = smul.u32 %s21, 8
      %s82 = sadd.s32 %s81, %s22
      %s83 = smul.u32 %s33, 8
      %s84 = sadd.s32 %s83, %s29
      %s85 = ssub.s32 %s82, %s84
      %p86 = scmp.eq.s32.totalorder %s85, 0
      %s88 = sadd.s32 %s87, 1
      %s89 = scalar_select %p86, %s87, %s88
      %p92 = pneg %p86
      %p93 = scmp.eq.s32.totalorder %s14, 15
      %p94 = por %p92, %p93
      %p95 = scmp.ne.s32.totalorder %s87, %s90
      %p96 = scmp.eq.s32.totalorder %s14, 0
      %p97 = por %p95, %p96
      %p98 = scmp.ne.s32.totalorder %s87, %s90
      %p99 = scmp.eq.s32.totalorder %s19, 15
      %p100 = por %p98, %p99
      %p101 = scmp.ne.s32.totalorder %s90, %s91
      %p102 = scmp.eq.s32.totalorder %s19, 0
      %p103 = por %p101, %p102
      %p104 = scmp.ne.s32.totalorder %s90, %s91
      %p105 = scmp.eq.s32.totalorder %s20, 15
      %p106 = por %p104, %p105
      %p108 = scmp.ne.s32.totalorder %s91, %s107
      %p109 = scmp.eq.s32.totalorder %s20, 0
      %p110 = por %p108, %p109
      %s112 = sadd.s32 %s111, 1
      %p115 = scmp.eq.s32.totalorder %s14, 15
      %p116 = scmp.ne.s32.totalorder %s111, %s113
      %p117 = scmp.eq.s32.totalorder %s14, 0
      %p118 = por %p116, %p117
      %p119 = scmp.ne.s32.totalorder %s111, %s113
      %p120 = scmp.eq.s32.totalorder %s19, 15
      %p121 = por %p119, %p120
      %p122 = scmp.ne.s32.totalorder %s113, %s114
      %p123 = scmp.eq.s32.totalorder %s19, 0
      %p124 = por %p122, %p123
      %p125 = scmp.ne.s32.totalorder %s113, %s114
      %p126 = scmp.eq.s32.totalorder %s20, 15
      %p127 = por %p125, %p126
      %p129 = scmp.ne.s32.totalorder %s114, %s128
      %p130 = scmp.eq.s32.totalorder %s20, 0
      %p131 = por %p129, %p130
      %s133 = sadd.s32 %s132, 1
      %p136 = scmp.eq.s32.totalorder %s14, 15
      %p137 = scmp.ne.s32.totalorder %s132, %s134
      %p138 = scmp.eq.s32.totalorder %s14, 0
      %p139 = por %p137, %p138
      %p140 = scmp.ne.s32.totalorder %s132, %s134
      %p141 = scmp.eq.s32.totalorder %s19, 15
      %p142 = por %p140, %p141
      %p143 = scmp.ne.s32.totalorder %s134, %s135
      %p144 = scmp.eq.s32.totalorder %s19, 0
      %p145 = por %p143, %p144
      %p146 = scmp.ne.s32.totalorder %s134, %s135
      %p147 = scmp.eq.s32.totalorder %s20, 15
      %p148 = por %p146, %p147
      %p150 = scmp.ne.s32.totalorder %s135, %s149
      %p151 = scmp.eq.s32.totalorder %s20, 0
      %p152 = por %p150, %p151
      %s154 = sadd.s32 %s153, 1
      %p157 = scmp.eq.s32.totalorder %s14, 15
      %p158 = scmp.ne.s32.totalorder %s153, %s155
      %p159 = scmp.eq.s32.totalorder %s14, 0
      %p160 = por %p158, %p159
      %p161 = scmp.ne.s32.totalorder %s153, %s155
      %p162 = scmp.eq.s32.totalorder %s19, 15
      %p163 = por %p161, %p162
      %p164 = scmp.ne.s32.totalorder %s155, %s156
      %p165 = scmp.eq.s32.totalorder %s19, 0
      %p166 = por %p164, %p165
      %p167 = scmp.ne.s32.totalorder %s155, %s156
      %p168 = scmp.eq.s32.totalorder %s20, 15
      %p169 = por %p167, %p168
      %p171 = scmp.ne.s32.totalorder %s156, %s170
      %p172 = scmp.eq.s32.totalorder %s20, 0
      %p173 = por %p171, %p172
      %s174 = ssub.s32 %s21, %s33
      %s175 = ssub.s32 %s22, %s29
      %s176 = sor.u32 %s174, %s175
      %p177 = scmp.eq.s32.totalorder %s176, 0
      %s179 = sadd.s32 %s178, 1
      %s180 = scalar_select %p177, %s178, %s179
      %p183 = pneg %p177
      %p184 = scmp.eq.s32.totalorder %s14, 15
      %p185 = por %p183, %p184
      %p186 = scmp.ne.s32.totalorder %s178, %s181
      %p187 = scmp.eq.s32.totalorder %s14, 0
      %p188 = por %p186, %p187
      %p189 = scmp.ne.s32.totalorder %s178, %s181
      %p190 = scmp.eq.s32.totalorder %s19, 15
      %p191 = por %p189, %p190
      %p192 = scmp.ne.s32.totalorder %s181, %s182
      %p193 = scmp.eq.s32.totalorder %s19, 0
      %p194 = por %p192, %p193
      %p195 = scmp.ne.s32.totalorder %s181, %s182
      %p196 = scmp.eq.s32.totalorder %s20, 15
      %p197 = por %p195, %p196
      %p199 = scmp.ne.s32.totalorder %s182, %s198
      %p200 = scmp.eq.s32.totalorder %s20, 0
      %p201 = por %p199, %p200
      %s202 = ssub.s32 %s21, %s33
      %p203 = scmp.eq.s32.totalorder %s202, 0
      %s205 = sadd.s32 %s204, 1
      %s206 = scalar_select %p203, %s204, %s205
      %p209 = pneg %p203
      %p210 = scmp.eq.s32.totalorder %s14, 15
      %p211 = por %p209, %p210
      %p212 = scmp.ne.s32.totalorder %s204, %s207
      %p213 = scmp.eq.s32.totalorder %s14, 0
      %p214 = por %p212, %p213
      %p215 = scmp.ne.s32.totalorder %s204, %s207
      %p216 = scmp.eq.s32.totalorder %s19, 15
      %p217 = por %p215, %p216
      %p218 = scmp.ne.s32.totalorder %s207, %s208
      %p219 = scmp.eq.s32.totalorder %s19, 0
      %p220 = por %p218, %p219
      %p221 = scmp.ne.s32.totalorder %s207, %s208
      %p222 = scmp.eq.s32.totalorder %s20, 15
      %p223 = por %p221, %p222
      %p225 = scmp.ne.s32.totalorder %s208, %s224
      %p226 = scmp.eq.s32.totalorder %s20, 0
      %p227 = por %p225, %p226
      %p228 = scmp.le.s32.totalorder 1, %s14
      %p229 = scmp.lt.s32.totalorder %s14, 17
      %p230 = pnand %p228, %p229
      %p231 = pneg %p230
      // Predicated region
      $region9: #{tpu_custom_call.1} parent=5 // pred_check
        _
      $region10: #{tpu_custom_call.1} parent=5 // pred_check_branch
        %233 = sbr.rel (%p230) target = $region12
      $region11: #{tpu_custom_call.1} parent=5 // pred_region
        %s234 = ssub.s32 %s14, 1
        // Predicated region
        $region13: #{tpu_custom_call.1} parent=11 // pred_check
          %p235 = pneg %p47
        $region14: #{tpu_custom_call.1} parent=11 // pred_check_branch
          %237 = sbr.rel (%p235) target = $region16
        $region15: #{tpu_custom_call.1} parent=11 // pred_region
          %s239 = ssub.s32 128, 128
          %240 = vsyncadd [#allocation3], %s239
          %s242 = sshll.u32 %s0, 4
          %s243 = int_to_ptr.vmem [resolvable:$true] %s242
          %245 = dma.vmem_to_smem %s243, 128, [#allocation2], [#allocation3]
        $region16: #{tpu_custom_call.1} parent=11 // pred_fallthru
          _
        // Predicated region
        $region17: #{tpu_custom_call.1} parent=11 // pred_check
          %p246 = pneg %p124
        $region18: #{tpu_custom_call.1} parent=11 // pred_check_branch
          %248 = sbr.rel (%p246) target = $region20
        $region19: #{tpu_custom_call.1} parent=11 // pred_region
          _
        $region20: #{tpu_custom_call.1} parent=11 // pred_fallthru
          _
        // Predicated region
        $region21: #{tpu_custom_call.1} parent=11 // pred_check
          %p249 = pneg %p145
        $region22: #{tpu_custom_call.1} parent=11 // pred_check_branch
          %251 = sbr.rel (%p249) target = $region24
        $region23: #{tpu_custom_call.1} parent=11 // pred_region
          _
        $region24: #{tpu_custom_call.1} parent=11 // pred_fallthru
          _
        // Predicated region
        $region25: #{tpu_custom_call.1} parent=11 // pred_check
          %p252 = pneg %p166
        $region26: #{tpu_custom_call.1} parent=11 // pred_check_branch
          %254 = sbr.rel (%p252) target = $region28
        $region27: #{tpu_custom_call.1} parent=11 // pred_region
          _
        $region28: #{tpu_custom_call.1} parent=11 // pred_fallthru
          _
      $region12: #{tpu_custom_call.1} parent=5 // pred_fallthru
        _
      %p255 = scmp.lt.s32.totalorder %s14, 16
      // Predicated region
      $region29: #{tpu_custom_call.1} parent=5 // pred_check
        %p256 = pneg %p255
      $region30: #{tpu_custom_call.1} parent=5 // pred_check_branch
        %258 = sbr.rel (%p256) target = $region32
      $region31: #{tpu_custom_call.1} parent=5 // pred_region
        // Predicated region
        $region33: #{tpu_custom_call.1} parent=31 // pred_check
          %p259 = pneg %p67
        $region34: #{tpu_custom_call.1} parent=31 // pred_check_branch
          %261 = sbr.rel (%p259) target = $region36
        $region35: #{tpu_custom_call.1} parent=31 // pred_region
          %p262 = scmp.lt.s32.totalorder %s21, 1
          %s263 = scalar_select %p262, %s21, 1
          %s264 = smul.addr %s263, 2
          %s265 = smul.addr %s264, 4
          %s266 = scalar_lea.vmem %s1, %s265
        $region36: #{tpu_custom_call.1} parent=31 // pred_fallthru
          _
        // Predicated region
        $region37: #{tpu_custom_call.1} parent=31 // pred_check
          %p267 = pneg %p97
        $region38: #{tpu_custom_call.1} parent=31 // pred_check_branch
          %269 = sbr.rel (%p267) target = $region40
        $region39: #{tpu_custom_call.1} parent=31 // pred_region
          %s270 = smul.u32 %s21, 8
          %s271 = sadd.s32 %s270, %s22
          %p272 = scmp.lt.s32.totalorder %s271, 15
          %s273 = scalar_select %p272, %s271, 15
          %s274 = smul.addr %s273, 4
          %s275 = smul.addr %s274, 8
          %s276 = scalar_lea.vmem %s2, %s275
          %s277 = smul.u32 %s21, 8
          %s278 = sadd.s32 %s277, %s22
        $region40: #{tpu_custom_call.1} parent=31 // pred_fallthru
          _
        // Predicated region
        $region41: #{tpu_custom_call.1} parent=31 // pred_check
          %p279 = pneg %p188
        $region42: #{tpu_custom_call.1} parent=31 // pred_check_branch
          %281 = sbr.rel (%p279) target = $region44
        $region43: #{tpu_custom_call.1} parent=31 // pred_region
          %p282 = scmp.lt.s32.totalorder %s21, 1
          %s283 = scalar_select %p282, %s21, 1
          %p284 = scmp.lt.s32.totalorder %s22, 7
          %s285 = scalar_select %p284, %s22, 7
          %s286 = smul.addr %s285, 2
          %s287 = smul.addr %s283, 16
          %s288 = sadd.s32 %s286, %s287
          %s289 = smul.addr %s288, 4
          %s290 = scalar_lea.vmem %s6, %s289
        $region44: #{tpu_custom_call.1} parent=31 // pred_fallthru
          _
      $region32: #{tpu_custom_call.1} parent=5 // pred_fallthru
        _
      %p291 = scmp.le.s32.totalorder 1, %s14
      %p292 = scmp.lt.s32.totalorder %s14, 17
      %p293 = pnand %p291, %p292
      %p294 = pneg %p293
      // Predicated region
      $region45: #{tpu_custom_call.1} parent=5 // pred_check
        _
      $region46: #{tpu_custom_call.1} parent=5 // pred_check_branch
        %296 = sbr.rel (%p293) target = $region48
      $region47: #{tpu_custom_call.1} parent=5 // pred_region
        %s297 = ssub.s32 %s14, 1
        // Predicated region
        $region49: #{tpu_custom_call.1} parent=47 // pred_check
          %p298 = pneg %p47
        $region50: #{tpu_custom_call.1} parent=47 // pred_check_branch
          %300 = sbr.rel (%p298) target = $region52
        $region51: #{tpu_custom_call.1} parent=47 // pred_region
          %301 = dma.done [#allocation3], 128
        $region52: #{tpu_custom_call.1} parent=47 // pred_fallthru
          _
        %302 = sfence
        %p303 = pneg %p47
        %p304 = pneg %p44
        %p305 = scmp.lt.s32.totalorder %s23, 1
        %s306 = scalar_select %p305, %s23, 1
        %s307 = smul.addr %s306, 2
        %s308 = smul.addr %s307, 4
        %s309 = scalar_lea.vmem %s1, %s308
        %p310 = pneg %p73
        %p311 = pneg %p70
        %s312 = smul.u32 %s23, 8
        %s313 = sadd.s32 %s312, %s24
        %p314 = scmp.lt.s32.totalorder %s313, 15
        %s315 = scalar_select %p314, %s313, 15
        %s316 = smul.addr %s315, 4
        %s317 = smul.addr %s316, 8
        %s318 = scalar_lea.vmem %s2, %s317
        %p319 = pneg %p103
        %p320 = pneg %p100
        %p321 = pneg %p124
        %p322 = pneg %p121
        %p323 = pneg %p145
        %p324 = pneg %p142
        %p325 = pneg %p166
        %p326 = pneg %p163
        %p327 = scmp.lt.s32.totalorder %s23, 1
        %s328 = scalar_select %p327, %s23, 1
        %p329 = scmp.lt.s32.totalorder %s24, 7
        %s330 = scalar_select %p329, %s24, 7
        %s331 = smul.addr %s330, 2
        %s332 = smul.addr %s328, 16
        %s333 = sadd.s32 %s331, %s332
        %s334 = smul.addr %s333, 4
        %s335 = scalar_lea.vmem %s6, %s334
        %p336 = pneg %p194
        %p337 = pneg %p191
        %p338 = pneg %p220
        %p339 = pneg %p217
        %p340 = scmp.lt.s32.totalorder %s23, 1
        %s341 = scalar_select %p340, %s23, 1
        %s342 = smul.addr %s341, 2
        %s343 = smul.addr %s342, 4
        %s344 = scalar_lea.vmem %s7, %s343
        %p345 = scmp.lt.s32.totalorder %s23, 1
        %s346 = scalar_select %p345, %s23, 1
        %s347 = smul.addr %s346, 2
        %s348 = smul.addr %s347, 4
        %s349 = scalar_lea.vmem %s1, %s348
        %s350 = smul.u32 %s23, 8
        %s351 = sadd.s32 %s350, %s24
        %p352 = scmp.lt.s32.totalorder %s351, 15
        %s353 = scalar_select %p352, %s351, 15
        %s354 = smul.addr %s353, 4
        %s355 = smul.addr %s354, 8
        %s356 = scalar_lea.vmem %s2, %s355
        %s357 = smul.u32 %s23, 8
        %s358 = sadd.s32 %s357, %s24
        %p359 = scmp.lt.s32.totalorder %s23, 1
        %s360 = scalar_select %p359, %s23, 1
        %p361 = scmp.lt.s32.totalorder %s24, 7
        %s362 = scalar_select %p361, %s24, 7
        %s363 = smul.addr %s362, 2
        %s364 = smul.addr %s360, 16
        %s365 = sadd.s32 %s363, %s364
        %s366 = smul.addr %s365, 4
        %s367 = scalar_lea.vmem %s6, %s366
        %p368 = scmp.lt.s32.totalorder %s23, 1
        %s369 = scalar_select %p368, %s23, 1
        %s370 = smul.addr %s369, 2
        %s371 = smul.addr %s370, 4
        %s372 = scalar_lea.vmem %s7, %s371
        %p373 = scmp.eq.s32.totalorder %s24, 0
        // Predicated region
        $region53: #{tpu_custom_call.1} parent=47 // pred_check
          %p374 = pneg %p373
        $region54: #{tpu_custom_call.1} parent=47 // pred_check_branch
          %376 = sbr.rel (%p374) target = $region56
        $region55: #{tpu_custom_call.1} parent=47 // pred_region
          %v377 = vld [vmem:[%s349] sm:$0x77]
          %378 = vst [vmem:[%s372] sm:$0x77] %v377
        $region56: #{tpu_custom_call.1} parent=47 // pred_fallthru
          _
        %v379 = vld [vmem:[%s372] sm:$0x77]
        %v380 = vld [vmem:[%s3] sm:$0xff]
        %v381 = vld [vmem:[%s3 + $0x8] sm:$0xff]
        %v382 = vld [vmem:[%s3 + $0x10] sm:$0xff]
        %v383 = vld [vmem:[%s3 + $0x18] sm:$0xff]
        %v384 = vld [vmem:[%s356] sm:$0xff]
        %v385 = vld [vmem:[%s356 + $0x8] sm:$0xff]
        %v386 = vld [vmem:[%s356 + $0x10] sm:$0xff]
        %v387 = vld [vmem:[%s356 + $0x18] sm:$0xff]
        %389 = vset.pattern.permute.xlu0 0
        %390 = vperm.xlu0 %389, %v380
        %v391 = vpop.permute.xlu0 %390
        %394 = vset.pattern.permute.xlu0 0
        %395 = vperm.xlu0 %394, %v381
        %v396 = vpop.permute.xlu0 %395
        %399 = vset.pattern.permute.xlu0 0
        %400 = vperm.xlu0 %399, %v382
        %v401 = vpop.permute.xlu0 %400
        %404 = vset.pattern.permute.xlu0 0
        %405 = vperm.xlu0 %404, %v383
        %v406 = vpop.permute.xlu0 %405
        %v409 = vlaneseq
        %v410 = vshrl.u32 %v409, 7
        %v411 = vsub.s32 0, %v410
        %v412 = vrot.slane %v379, %v411
        %v413 = vlaneseq
        %v414 = vshrl.u32 %v413, 7
        %v415 = vsub.s32 4, %v414
        %v416 = vrot.slane %v379, %v415
        %v419 = vlaneseq
        %v420 = vshrl.u32 %v419, 7
        %v421 = vsub.s32 0, %v420
        %v422 = vrot.slane %v412, %v421
        %v423 = vlaneseq
        %v424 = vshrl.u32 %v423, 7
        %v425 = vsub.s32 0, %v424
        %v426 = vrot.slane %v416, %v425
        %v427 = vmul.f32 %v391, %v422
        %v428 = vmul.f32 %v391, %v426
        %v429 = vmul.f32 %v396, %v422
        %v430 = vmul.f32 %v396, %v426
        %v431 = vmul.f32 %v401, %v422
        %v432 = vmul.f32 %v401, %v426
        %v433 = vmul.f32 %v406, %v422
        %v434 = vmul.f32 %v406, %v426
        %436 = vset.pattern.permute.xlu0 0
        %437 = vperm.xlu0 %436, %v384
        %v438 = vpop.permute.xlu0 %437
        %441 = vset.pattern.permute.xlu0 0
        %442 = vperm.xlu0 %441, %v385
        %v443 = vpop.permute.xlu0 %442
        %446 = vset.pattern.permute.xlu0 0
        %447 = vperm.xlu0 %446, %v386
        %v448 = vpop.permute.xlu0 %447
        %451 = vset.pattern.permute.xlu0 0
        %452 = vperm.xlu0 %451, %v387
        %v453 = vpop.permute.xlu0 %452
        %v455 = vadd.f32 %v438, %v427
        %v456 = vadd.f32 %v438, %v428
        %v457 = vadd.f32 %v443, %v429
        %v458 = vadd.f32 %v443, %v430
        %v459 = vadd.f32 %v448, %v431
        %v460 = vadd.f32 %v448, %v432
        %v461 = vadd.f32 %v453, %v433
        %v462 = vadd.f32 %v453, %v434
        %463 = vset.pattern.permute.xlu0 1
        %464 = vperm.xlu0 %463, %v380
        %v465 = vpop.permute.xlu0 %464
        %467 = vset.pattern.permute.xlu0 1
        %468 = vperm.xlu0 %467, %v381
        %v469 = vpop.permute.xlu0 %468
        %471 = vset.pattern.permute.xlu0 1
        %472 = vperm.xlu0 %471, %v382
        %v473 = vpop.permute.xlu0 %472
        %475 = vset.pattern.permute.xlu0 1
        %476 = vperm.xlu0 %475, %v383
        %v477 = vpop.permute.xlu0 %476
        %v479 = vlaneseq
        %v480 = vshrl.u32 %v479, 7
        %v481 = vsub.s32 1, %v480
        %v482 = vrot.slane %v379, %v481
        %v483 = vlaneseq
        %v484 = vshrl.u32 %v483, 7
        %v485 = vsub.s32 5, %v484
        %v486 = vrot.slane %v379, %v485
        %v489 = vlaneseq
        %v490 = vshrl.u32 %v489, 7
        %v491 = vsub.s32 1, %v490
        %v492 = vrot.slane %v482, %v491
        %v493 = vlaneseq
        %v494 = vshrl.u32 %v493, 7
        %v495 = vsub.s32 1, %v494
        %v496 = vrot.slane %v486, %v495
        %v497 = vmul.f32 %v465, %v492
        %v498 = vmul.f32 %v465, %v496
        %v499 = vmul.f32 %v469, %v492
        %v500 = vmul.f32 %v469, %v496
        %v501 = vmul.f32 %v473, %v492
        %v502 = vmul.f32 %v473, %v496
        %v503 = vmul.f32 %v477, %v492
        %v504 = vmul.f32 %v477, %v496
        %v505 = vadd.f32 %v455, %v497
        %v506 = vadd.f32 %v456, %v498
        %v507 = vadd.f32 %v457, %v499
        %v508 = vadd.f32 %v458, %v500
        %v509 = vadd.f32 %v459, %v501
        %v510 = vadd.f32 %v460, %v502
        %v511 = vadd.f32 %v461, %v503
        %v512 = vadd.f32 %v462, %v504
        %513 = vset.pattern.permute.xlu0 2
        %514 = vperm.xlu0 %513, %v380
        %v515 = vpop.permute.xlu0 %514
        %517 = vset.pattern.permute.xlu0 2
        %518 = vperm.xlu0 %517, %v381
        %v519 = vpop.permute.xlu0 %518
        %521 = vset.pattern.permute.xlu0 2
        %522 = vperm.xlu0 %521, %v382
        %v523 = vpop.permute.xlu0 %522
        %525 = vset.pattern.permute.xlu0 2
        %526 = vperm.xlu0 %525, %v383
        %v527 = vpop.permute.xlu0 %526
        %v529 = vlaneseq
        %v530 = vshrl.u32 %v529, 7
        %v531 = vsub.s32 2, %v530
        %v532 = vrot.slane %v379, %v531
        %v533 = vlaneseq
        %v534 = vshrl.u32 %v533, 7
        %v535 = vsub.s32 6, %v534
        %v536 = vrot.slane %v379, %v535
        %v539 = vlaneseq
        %v540 = vshrl.u32 %v539, 7
        %v541 = vsub.s32 2, %v540
        %v542 = vrot.slane %v532, %v541
        %v543 = vlaneseq
        %v544 = vshrl.u32 %v543, 7
        %v545 = vsub.s32 2, %v544
        %v546 = vrot.slane %v536, %v545
        %v547 = vmul.f32 %v515, %v542
        %v548 = vmul.f32 %v515, %v546
        %v549 = vmul.f32 %v519, %v542
        %v550 = vmul.f32 %v519, %v546
        %v551 = vmul.f32 %v523, %v542
        %v552 = vmul.f32 %v523, %v546
        %v553 = vmul.f32 %v527, %v542
        %v554 = vmul.f32 %v527, %v546
        %v555 = vadd.f32 %v505, %v547
        %v556 = vadd.f32 %v506, %v548
        %v557 = vadd.f32 %v507, %v549
        %v558 = vadd.f32 %v508, %v550
        %v559 = vadd.f32 %v509, %v551
        %v560 = vadd.f32 %v510, %v552
        %v561 = vadd.f32 %v511, %v553
        %v562 = vadd.f32 %v512, %v554
        %v563 = vxor.u32 %v555, 2147483648
        %v564 = vxor.u32 %v556, 2147483648
        %v565 = vxor.u32 %v557, 2147483648
        %v566 = vxor.u32 %v558, 2147483648
        %v567 = vxor.u32 %v559, 2147483648
        %v568 = vxor.u32 %v560, 2147483648
        %v569 = vxor.u32 %v561, 2147483648
        %v570 = vxor.u32 %v562, 2147483648
        %v571 = vmul.f32 %v563, 1.442695
        %v572 = vpow.pop %v571
        %v573 = vmul.f32 %v564, 1.442695
        %v574 = vpow.pop %v573
        %v575 = vmul.f32 %v565, 1.442695
        %v576 = vpow.pop %v575
        %v577 = vmul.f32 %v566, 1.442695
        %v578 = vpow.pop %v577
        %v579 = vmul.f32 %v567, 1.442695
        %v580 = vpow.pop %v579
        %v581 = vmul.f32 %v568, 1.442695
        %v582 = vpow.pop %v581
        %v583 = vmul.f32 %v569, 1.442695
        %v584 = vpow.pop %v583
        %v585 = vmul.f32 %v570, 1.442695
        %v586 = vpow.pop %v585
        %v587 = vadd.f32 %v572, 1.0
        %v588 = vadd.f32 %v574, 1.0
        %v589 = vadd.f32 %v576, 1.0
        %v590 = vadd.f32 %v578, 1.0
        %v591 = vadd.f32 %v580, 1.0
        %v592 = vadd.f32 %v582, 1.0
        %v593 = vadd.f32 %v584, 1.0
        %v594 = vadd.f32 %v586, 1.0
        %v595 = vrcp.pop %v587
        %v596 = vmul.f32 1.0, %v595
        %v597 = vrcp.pop %v588
        %v598 = vmul.f32 1.0, %v597
        %v599 = vrcp.pop %v589
        %v600 = vmul.f32 1.0, %v599
        %v601 = vrcp.pop %v590
        %v602 = vmul.f32 1.0, %v601
        %v603 = vrcp.pop %v591
        %v604 = vmul.f32 1.0, %v603
        %v605 = vrcp.pop %v592
        %v606 = vmul.f32 1.0, %v605
        %v607 = vrcp.pop %v593
        %v608 = vmul.f32 1.0, %v607
        %v609 = vrcp.pop %v594
        %v610 = vmul.f32 1.0, %v609
        %v611 = vmul.f32 %v555, %v596
        %v612 = vmul.f32 %v556, %v598
        %v613 = vmul.f32 %v557, %v600
        %v614 = vmul.f32 %v558, %v602
        %v615 = vmul.f32 %v559, %v604
        %v616 = vmul.f32 %v560, %v606
        %v617 = vmul.f32 %v561, %v608
        %v618 = vmul.f32 %v562, %v610
        %v619 = vld [vmem:[%s4] sm:$0x7]
        %v620 = vld [vmem:[%s5] sm:$0x7]
        %622 = vset.pattern.permute.xlu0 0
        %623 = vperm.xlu0 %622, %v620
        %v624 = vpop.permute.xlu0 %623
        %vm626 = vcmask 261120
        %v628 = vsel %vm626, %v619, 0
        %630 = vmatprep.subr.mxu0 %v612
        %631 = vmatpush1.msra.mxu0 %v611
        %632 = vmatprep.subr.mxu0 %v614
        %633 = vmatpush1.msra.mxu0 %v613
        %634 = vmatprep.subr.mxu0 %v616
        %635 = vmatpush1.msra.mxu0 %v615
        %636 = vmatprep.subr.mxu0 %v618
        %637 = vmatpush1.msra.mxu0 %v617
        %638 = vmatprep.subr.mxu0 0.0
        %639 = vmatpush1.msra.mxu0 0.0
        %640 = vmatprep.subr.mxu0 0.0
        %641 = vmatpush1.msra.mxu0 0.0
        %642 = vmatprep.subr.mxu0 0.0
        %643 = vmatpush1.msra.mxu0 0.0
        %644 = vmatprep.subr.mxu0 0.0
        %645 = vmatpush1.msra.mxu0 0.0
        %646 = vmatprep.subr.mxu0 0.0
        %647 = vmatpush1.msra.mxu0 0.0
        %648 = vmatprep.subr.mxu0 0.0
        %649 = vmatpush1.msra.mxu0 0.0
        %650 = vmatprep.subr.mxu0 0.0
        %651 = vmatpush1.msra.mxu0 0.0
        %652 = vmatprep.subr.mxu0 0.0
        %653 = vmatpush1.msra.mxu0 0.0
        %654 = vmatprep.subr.mxu0 0.0
        %655 = vmatpush1.msra.mxu0 0.0
        %656 = vmatprep.subr.mxu0 0.0
        %657 = vmatpush1.msra.mxu0 0.0
        %658 = vmatprep.subr.mxu0 0.0
        %659 = vmatpush1.msra.mxu0 0.0
        %660 = vmatprep.subr.mxu0 0.0
        %661 = vmatpush1.msra.mxu0 0.0
        %662 = vmatprep.subr.mxu0 0.0
        %663 = vmatpush1.msra.mxu0 0.0
        %664 = vmatprep.subr.mxu0 0.0
        %665 = vmatpush1.msra.mxu0 0.0
        %666 = vmatprep.subr.mxu0 0.0
        %667 = vmatpush1.msra.mxu0 0.0
        %668 = vmatprep.subr.mxu0 0.0
        %669 = vmatpush1.msra.mxu0 0.0
        %670 = vmatprep.subr.mxu0 0.0
        %671 = vmatpush1.msra.mxu0 0.0
        %672 = vmatprep.subr.mxu0 0.0
        %673 = vmatpush1.msra.mxu0 0.0
        %674 = vmatprep.subr.mxu0 0.0
        %675 = vmatpush1.msra.mxu0 0.0
        %676 = vmatprep.subr.mxu0 0.0
        %677 = vmatpush1.msra.mxu0 0.0
        %678 = vmatprep.subr.mxu0 0.0
        %679 = vmatpush1.msra.mxu0 0.0
        %680 = vmatprep.subr.mxu0 0.0
        %681 = vmatpush1.msra.mxu0 0.0
        %682 = vmatprep.subr.mxu0 0.0
        %683 = vmatpush1.msra.mxu0 0.0
        %684 = vmatprep.subr.mxu0 0.0
        %685 = vmatpush1.msra.mxu0 0.0
        %686 = vmatprep.subr.mxu0 0.0
        %687 = vmatpush1.msra.mxu0 0.0
        %688 = vmatprep.subr.mxu0 0.0
        %689 = vmatpush1.msra.mxu0 0.0
        %690 = vmatprep.subr.mxu0 0.0
        %691 = vmatpush1.msra.mxu0 0.0
        %692 = vmatprep.subr.mxu0 0.0
        %693 = vmatpush1.msra.mxu0 0.0
        %694 = vmatprep.mubr.f32.mxu0 0.0
        %695 = vmatmul.mubr.f32.gmra.mrb[0].mxu0 %v628
        %v696 = vpop.f32.mrb[0].mxu0
        %v697 = vadd.f32 %v624, %v696
        %v698 = vpop.f32.mrb[0].mxu0
        %v699 = vadd.f32 %v624, %v698
        %700 = vdwg.mxu0
        %s701 = smul.u32 %s24, 128
        %s702 = sld [smem:[#allocation2 + %s701]]
        %s703 = sadd.s32 %s701, 1
        %s704 = sld [smem:[#allocation2 + %s703]]
        %s705 = sadd.s32 %s701, 2
        %s706 = sld [smem:[#allocation2 + %s705]]
        %v707 = vstv %s702
        %v708 = vmul.f32 %v707, %v379
        %v709 = vstv %s704
        %v710 = vmul.f32 %v709, %v697
        %v711 = vmul.f32 %v709, %v699
        %v714 = vcombine.low %v710, %v711
        %v716 = vsub.f32 %v708, %v714
        %v717 = vmax.f32 %v716, -1.0
        %v718 = vmin.f32 %v717, 1.0
        %v719 = vstv %s706
        %v720 = vmul.f32 %v719, %v718
        %s721 = sadd.s32 %s701, 3
        %s722 = sld [smem:[#allocation2 + %s721]]
        %v723 = vstv %s722
        %v724 = vmul.f32 %v723, %v379
        %v725 = vadd.f32 %v720, %v724
        %s726 = sadd.s32 %s701, 5
        %s727 = sld [smem:[#allocation2 + %s726]]
        %v728 = vld [vmem:[%s367] sm:$0x77]
        %v729 = vstv %s727
        %v730 = vmul.f32 %v729, %v728
        %v731 = vadd.f32 %v725, %v730
        %732 = vst [vmem:[%s372] sm:$0x77] %v731
        %p733 = scmp.lt.s32.totalorder %s23, 1
        %s734 = scalar_select %p733, %s23, 1
        %s735 = smul.addr %s734, 2
        %s736 = smul.addr %s735, 4
        %s737 = scalar_lea.vmem %s7, %s736
        // Predicated region
        $region57: #{tpu_custom_call.1} parent=47 // pred_check
          %p738 = pneg %p217
        $region58: #{tpu_custom_call.1} parent=47 // pred_check_branch
          %740 = sbr.rel (%p738) target = $region60
        $region59: #{tpu_custom_call.1} parent=47 // pred_region
          _
        $region60: #{tpu_custom_call.1} parent=47 // pred_fallthru
          _
      $region48: #{tpu_custom_call.1} parent=5 // pred_fallthru
        _
      %p741 = scmp.le.s32.totalorder 2, %s14
      // Predicated region
      $region61: #{tpu_custom_call.1} parent=5 // pred_check
        %p742 = pneg %p741
      $region62: #{tpu_custom_call.1} parent=5 // pred_check_branch
        %744 = sbr.rel (%p742) target = $region64
      $region63: #{tpu_custom_call.1} parent=5 // pred_region
        %s745 = ssub.s32 %s14, 2
        // Predicated region
        $region65: #{tpu_custom_call.1} parent=63 // pred_check
          %p746 = pneg %p223
        $region66: #{tpu_custom_call.1} parent=63 // pred_check_branch
          %748 = sbr.rel (%p746) target = $region68
        $region67: #{tpu_custom_call.1} parent=63 // pred_region
          %p749 = scmp.lt.s32.totalorder %s25, 1
          %s750 = scalar_select %p749, %s25, 1
          %s751 = smul.addr %s750, 2
          %s752 = smul.addr %s751, 4
          %s753 = scalar_lea.vmem %s7, %s752
        $region68: #{tpu_custom_call.1} parent=63 // pred_fallthru
          _
      $region64: #{tpu_custom_call.1} parent=5 // pred_fallthru
        _
    $region6: #{tpu_custom_call.1} parent=1 // loop_footer
      %s18 = sadd.s32 1, %s14
    $region7: #{tpu_custom_call.1} parent=1 // loop_footer_branch
      %13 = sbr.rel target = $region3
    $region8: #{tpu_custom_call.1} parent=1 // loop_exit
      _
    %754 = vsyncpa [#allocation3], 1
    %s755 = scalar_lea.sflag [#allocation3], 1
    %756 = vsyncpa %s755, 1

</llo_original>
